<compile_context>
chip_gen: v7x
topology: tpu7x:2x2x1
jax: 0.10.0
libtpu: 0.0.40
codegen_flags: <defaults>
</compile_context>

<pallas_src>
import math
import functools

import jax
import jax.numpy as jnp
from jax.experimental import pallas as pl
from jax.experimental.pallas import tpu as pltpu

_EPS = 1e-9
_LANES = 128


def _rcp(x):
    """Reciprocal: approx EUP rcp + one Newton-Raphson step (rel err ~1e-7)."""
    r = pl.reciprocal(x, approx=True)
    return r * (2.0 - x * r)


def _iou_loss_kernel(b_ref, o_ref, *, giou, diou, ciou, loss_square,
                     loss_weight):
    # b_ref: (8, BR, 128) f32 coordinate planes:
    #   [0..3] = px1, py1, px2, py2   [4..7] = gx1, gy1, gx2, gy2
    px1 = b_ref[0]
    py1 = b_ref[1]
    px2 = b_ref[2]
    py2 = b_ref[3]
    gx1 = b_ref[4]
    gy1 = b_ref[5]
    gx2 = b_ref[6]
    gy2 = b_ref[7]

    # intersection
    x1 = jnp.maximum(px1, gx1)
    y1 = jnp.maximum(py1, gy1)
    x2 = jnp.minimum(px2, gx2)
    y2 = jnp.minimum(py2, gy2)
    overlap = jnp.maximum(x2 - x1, 0.0) * jnp.maximum(y2 - y1, 0.0)

    # areas (clip the product, like the reference bbox_iou)
    area1 = jnp.maximum((px2 - px1) * (py2 - py1), 0.0)
    area2 = jnp.maximum((gx2 - gx1) * (gy2 - gy1), 0.0)
    union = area1 + area2 - overlap + _EPS
    iou = overlap * _rcp(union)

    if giou or diou or ciou:
        # smallest enclosing box
        cw = jnp.maximum(px2, gx2) - jnp.minimum(px1, gx1)
        ch = jnp.maximum(py2, gy2) - jnp.minimum(py1, gy1)
        if giou:
            c_area = cw * ch + _EPS
            iou = iou - (c_area - union) * _rcp(c_area)
        else:
            c2 = cw * cw + ch * ch + _EPS
            rho2 = ((px1 + px2 - gx1 - gx2) ** 2 +
                    (py1 + py2 - gy1 - gy2) ** 2) * 0.25
            if diou:
                iou = iou - rho2 * _rcp(c2)
            else:  # ciou
                w1 = px2 - px1
                h1 = py2 - py1 + _EPS
                w2 = gx2 - gx1
                h2 = gy2 - gy1 + _EPS
                a = w1 * _rcp(h1)
                b = w2 * _rcp(h2)
                ab = a * b
                # arctan(a) - arctan(b) == arctan((a-b)/(1+ab)) + k*pi where
                # k = 0 for ab > -1 (always true for non-degenerate boxes) and
                # k = +-1 (sign of a) for ab < -1 (inverted boxes) -- fixed up
                # below so degenerate inputs still match the reference.
                delta = jnp.arctan((a - b) * _rcp(1.0 + ab))
                delta = delta + jnp.where(
                    ab < -1.0,
                    jnp.where(a > 0.0, math.pi, -math.pi),
                    0.0)
                v = (4.0 / (math.pi ** 2)) * delta * delta
                # reference detaches alpha; stop_gradient is a forward no-op.
                alpha = jax.lax.stop_gradient(v * _rcp(1.0 + _EPS - iou + v))
                iou = iou - (rho2 * _rcp(c2) + v * alpha)

    if loss_square:
        loss = 1.0 - iou * iou
    else:
        loss = 1.0 - iou

    o_ref[...] = loss * loss_weight


def _round_up(x, m):
    return ((x + m - 1) // m) * m


def iou_loss(pbox, gbox, *, loss_weight=2.5, giou=False, diou=False,
             ciou=False, loss_square=True, block_rows=1024):
    """pbox, gbox: (N, 4) float32 boxes (x1, y1, x2, y2). Returns (N,) loss."""
    assert pbox.shape == gbox.shape and pbox.shape[-1] == 4
    n = pbox.shape[0]
    assert n >= 1

    # Number of 128-lane rows needed for N boxes, sublane-aligned (mult of 8).
    r = _round_up(pl.cdiv(n, _LANES), 8)

    # Adaptive block split: derive the number of blocks from r (no pad-up to a
    # fixed block size), force >=2 and even blocks once r is large enough so
    # the "parallel" grid axis can use both v7x TensorCores.
    nb = pl.cdiv(r, block_rows)
    if nb == 1 and r >= 512:
        nb = 2
    if nb > 1 and nb % 2:
        nb += 1
    br = _round_up(pl.cdiv(r, nb), 8)
    r_pad = _round_up(r, br)
    n_pad = r_pad * _LANES
    grid = r_pad // br

    # Pack both boxes into one coordinate-planar (8, R, 128) array.  With
    # allow_input_fusion the concat/pad/transpose producer is fused into the
    # pallas_call input DMA rather than materialized in HBM.  Padded boxes are
    # zeros -> finite iou; their lanes are sliced off at the end.
    cat = jnp.concatenate(
        [pbox.astype(jnp.float32), gbox.astype(jnp.float32)], axis=-1)  # (N, 8)
    cat = jnp.pad(cat, ((0, n_pad - n), (0, 0)))                        # (n_pad, 8)
    planar = cat.T.reshape(8, r_pad, _LANES)                            # (8, R, 128)

    kernel = functools.partial(
        _iou_loss_kernel, giou=giou, diou=diou, ciou=ciou,
        loss_square=loss_square, loss_weight=float(loss_weight))

    out = pl.pallas_call(
        kernel,
        out_shape=jax.ShapeDtypeStruct((r_pad, _LANES), jnp.float32),
        grid=(grid,),
        in_specs=[pl.BlockSpec((8, br, _LANES), lambda i: (0, i, 0))],
        out_specs=pl.BlockSpec((br, _LANES), lambda i: (i, 0)),
        compiler_params=pltpu.CompilerParams(
            dimension_semantics=("parallel",),
            allow_input_fusion=[True]),
    )(planar)

    flat = out.reshape(-1)
    return flat if n == n_pad else flat[:n]


def _iou_loss_ref(pbox, gbox, *, loss_weight=2.5, giou=False, diou=False,
                  ciou=False, loss_square=True):
    """Pure-JAX reference of the PyTorch/PPDet forward semantics."""
    pbox = pbox.astype(jnp.float32)
    gbox = gbox.astype(jnp.float32)
    px1, py1, px2, py2 = (pbox[:, i] for i in range(4))
    gx1, gy1, gx2, gy2 = (gbox[:, i] for i in range(4))
    x1 = jnp.maximum(px1, gx1)
    y1 = jnp.maximum(py1, gy1)
    x2 = jnp.minimum(px2, gx2)
    y2 = jnp.minimum(py2, gy2)
    overlap = jnp.maximum(x2 - x1, 0.0) * jnp.maximum(y2 - y1, 0.0)
    area1 = jnp.maximum((px2 - px1) * (py2 - py1), 0.0)
    area2 = jnp.maximum((gx2 - gx1) * (gy2 - gy1), 0.0)
    union = area1 + area2 - overlap + _EPS
    iou = overlap / union
    if giou or diou or ciou:
        cw = jnp.maximum(px2, gx2) - jnp.minimum(px1, gx1)
        ch = jnp.maximum(py2, gy2) - jnp.minimum(py1, gy1)
        if giou:
            c_area = cw * ch + _EPS
            iou = iou - (c_area - union) / c_area
        else:
            c2 = cw ** 2 + ch ** 2 + _EPS
            rho2 = ((px1 + px2 - gx1 - gx2) ** 2 +
                    (py1 + py2 - gy1 - gy2) ** 2) / 4.0
            if diou:
                iou = iou - rho2 / c2
            else:
                w1, h1 = px2 - px1, py2 - py1 + _EPS
                w2, h2 = gx2 - gx1, gy2 - gy1 + _EPS
                delta = jnp.arctan(w1 / h1) - jnp.arctan(w2 / h2)
                v = (4.0 / math.pi ** 2) * delta ** 2
                alpha = v / (1.0 + _EPS - iou + v)
                iou = iou - (rho2 / c2 + v * alpha)
    loss = 1.0 - iou * iou if loss_square else 1.0 - iou
    return loss * loss_weight


def _make_boxes(key, n):
    """Deterministic random (x1, y1, x2, y2) boxes."""
    k_xy, k_wh = jax.random.split(key)
    xy = jax.random.uniform(k_xy, (n, 2), jnp.float32, 0.0, 10.0)
    wh = jax.random.uniform(k_wh, (n, 2), jnp.float32, 0.5, 5.0)
    return jnp.concatenate([xy, xy + wh], axis=-1)


if __name__ == "__main__":
    key = jax.random.PRNGKey(0)
    kp, kg = jax.random.split(key)
    N = 300  # deliberately not a multiple of 128 to exercise padding
    pbox = _make_boxes(kp, N)
    gbox = _make_boxes(kg, N)

    configs = (
        dict(),                                 # plain IoU, loss_square=True
        dict(giou=True),
        dict(diou=True),
        dict(ciou=True, loss_square=False),
    )
    for cfg in configs:
        got = iou_loss(pbox, gbox, **cfg)
        jax.block_until_ready(got)
        assert got.shape == (N,) and got.dtype == jnp.float32
        want = _iou_loss_ref(pbox, gbox, **cfg)
        assert bool(jnp.allclose(got, want, rtol=2e-4, atol=2e-4)), cfg

    print("KERNEL_OK")
</pallas_src>

<mosaic_0001>
module attributes {stable_mosaic.version = 11 : i64} {
  func.func @_iou_loss_kernel(%arg0: i32, %arg1: memref<8x8x128xf32, #tpu.memory_space<vmem>>, %arg2: memref<8x128xf32, #tpu.memory_space<vmem>>) attributes {dimension_semantics = [#tpu.dimension_semantics<parallel>], iteration_bounds = array<i64: 1>, scalar_prefetch = 0 : i64, scratch_operands = 0 : i64, tpu.core_type = #tpu.core_type<tc>, window_params = [{transform_indices = @transform_0, window_bounds = array<i64: 8, 8, 128>}, {transform_indices = @transform_1, window_bounds = array<i64: 8, 128>}]} {
    %c0 = arith.constant 0 : index
    %c0_0 = arith.constant 0 : index
    %c0_1 = arith.constant 0 : index
    %0 = vector.load %arg1[%c0, %c0_0, %c0_1] : memref<8x8x128xf32, #tpu.memory_space<vmem>>, vector<1x8x128xf32>
    %1 = vector.shape_cast %0 : vector<1x8x128xf32> to vector<8x128xf32>
    %c1 = arith.constant 1 : index
    %c0_2 = arith.constant 0 : index
    %c0_3 = arith.constant 0 : index
    %2 = vector.load %arg1[%c1, %c0_2, %c0_3] : memref<8x8x128xf32, #tpu.memory_space<vmem>>, vector<1x8x128xf32>
    %3 = vector.shape_cast %2 : vector<1x8x128xf32> to vector<8x128xf32>
    %c2 = arith.constant 2 : index
    %c0_4 = arith.constant 0 : index
    %c0_5 = arith.constant 0 : index
    %4 = vector.load %arg1[%c2, %c0_4, %c0_5] : memref<8x8x128xf32, #tpu.memory_space<vmem>>, vector<1x8x128xf32>
    %5 = vector.shape_cast %4 : vector<1x8x128xf32> to vector<8x128xf32>
    %c3 = arith.constant 3 : index
    %c0_6 = arith.constant 0 : index
    %c0_7 = arith.constant 0 : index
    %6 = vector.load %arg1[%c3, %c0_6, %c0_7] : memref<8x8x128xf32, #tpu.memory_space<vmem>>, vector<1x8x128xf32>
    %7 = vector.shape_cast %6 : vector<1x8x128xf32> to vector<8x128xf32>
    %c4 = arith.constant 4 : index
    %c0_8 = arith.constant 0 : index
    %c0_9 = arith.constant 0 : index
    %8 = vector.load %arg1[%c4, %c0_8, %c0_9] : memref<8x8x128xf32, #tpu.memory_space<vmem>>, vector<1x8x128xf32>
    %9 = vector.shape_cast %8 : vector<1x8x128xf32> to vector<8x128xf32>
    %c5 = arith.constant 5 : index
    %c0_10 = arith.constant 0 : index
    %c0_11 = arith.constant 0 : index
    %10 = vector.load %arg1[%c5, %c0_10, %c0_11] : memref<8x8x128xf32, #tpu.memory_space<vmem>>, vector<1x8x128xf32>
    %11 = vector.shape_cast %10 : vector<1x8x128xf32> to vector<8x128xf32>
    %c6 = arith.constant 6 : index
    %c0_12 = arith.constant 0 : index
    %c0_13 = arith.constant 0 : index
    %12 = vector.load %arg1[%c6, %c0_12, %c0_13] : memref<8x8x128xf32, #tpu.memory_space<vmem>>, vector<1x8x128xf32>
    %13 = vector.shape_cast %12 : vector<1x8x128xf32> to vector<8x128xf32>
    %c7 = arith.constant 7 : index
    %c0_14 = arith.constant 0 : index
    %c0_15 = arith.constant 0 : index
    %14 = vector.load %arg1[%c7, %c0_14, %c0_15] : memref<8x8x128xf32, #tpu.memory_space<vmem>>, vector<1x8x128xf32>
    %15 = vector.shape_cast %14 : vector<1x8x128xf32> to vector<8x128xf32>
    %16 = arith.maximumf %1, %9 : vector<8x128xf32>
    %17 = arith.maximumf %3, %11 : vector<8x128xf32>
    %18 = arith.minimumf %5, %13 : vector<8x128xf32>
    %19 = arith.minimumf %7, %15 : vector<8x128xf32>
    %20 = arith.subf %18, %16 : vector<8x128xf32>
    %cst = arith.constant 0.000000e+00 : f32
    %21 = vector.broadcast %cst : f32 to vector<8x128xf32>
    %22 = arith.maximumf %20, %21 : vector<8x128xf32>
    %23 = arith.subf %19, %17 : vector<8x128xf32>
    %cst_16 = arith.constant 0.000000e+00 : f32
    %24 = vector.broadcast %cst_16 : f32 to vector<8x128xf32>
    %25 = arith.maximumf %23, %24 : vector<8x128xf32>
    %26 = arith.mulf %22, %25 : vector<8x128xf32>
    %27 = arith.subf %5, %1 : vector<8x128xf32>
    %28 = arith.subf %7, %3 : vector<8x128xf32>
    %29 = arith.mulf %27, %28 : vector<8x128xf32>
    %cst_17 = arith.constant 0.000000e+00 : f32
    %30 = vector.broadcast %cst_17 : f32 to vector<8x128xf32>
    %31 = arith.maximumf %29, %30 : vector<8x128xf32>
    %32 = arith.subf %13, %9 : vector<8x128xf32>
    %33 = arith.subf %15, %11 : vector<8x128xf32>
    %34 = arith.mulf %32, %33 : vector<8x128xf32>
    %cst_18 = arith.constant 0.000000e+00 : f32
    %35 = vector.broadcast %cst_18 : f32 to vector<8x128xf32>
    %36 = arith.maximumf %34, %35 : vector<8x128xf32>
    %37 = arith.addf %31, %36 : vector<8x128xf32>
    %38 = arith.subf %37, %26 : vector<8x128xf32>
    %cst_19 = arith.constant 9.99999971E-10 : f32
    %39 = vector.broadcast %cst_19 : f32 to vector<8x128xf32>
    %40 = arith.addf %38, %39 : vector<8x128xf32>
    %41 = tpu.reciprocal %40 {approx = true} : vector<8x128xf32> -> vector<8x128xf32>
    %42 = arith.mulf %40, %41 : vector<8x128xf32>
    %cst_20 = arith.constant 2.000000e+00 : f32
    %43 = vector.broadcast %cst_20 : f32 to vector<8x128xf32>
    %44 = arith.subf %43, %42 : vector<8x128xf32>
    %45 = arith.mulf %41, %44 : vector<8x128xf32>
    %46 = arith.mulf %26, %45 : vector<8x128xf32>
    %47 = arith.mulf %46, %46 : vector<8x128xf32>
    %cst_21 = arith.constant 1.000000e+00 : f32
    %48 = vector.broadcast %cst_21 : f32 to vector<8x128xf32>
    %49 = arith.subf %48, %47 : vector<8x128xf32>
    %cst_22 = arith.constant 2.500000e+00 : f32
    %50 = vector.broadcast %cst_22 : f32 to vector<8x128xf32>
    %51 = arith.mulf %49, %50 : vector<8x128xf32>
    %c0_23 = arith.constant 0 : index
    %c0_24 = arith.constant 0 : index
    %52 = vector.load %arg2[%c0_23, %c0_24] : memref<8x128xf32, #tpu.memory_space<vmem>>, vector<8x128xf32>
    tpu.vector_store %arg2[%c0_23, %c0_24], %51 {strides = array<i32>} : memref<8x128xf32, #tpu.memory_space<vmem>>, vector<8x128xf32>,
    return
  }
  func.func @transform_0(%arg0: i32) -> (i32, i32, i32) {
    %c0_i32 = arith.constant 0 : i32
    %c0_i32_0 = arith.constant 0 : i32
    %c0_i32_1 = arith.constant 0 : i32
    return %c0_i32, %arg0, %c0_i32_0 : i32, i32, i32
  }
  func.func @transform_1(%arg0: i32) -> (i32, i32) {
    %c0_i32 = arith.constant 0 : i32
    %c0_i32_0 = arith.constant 0 : i32
    return %arg0, %c0_i32 : i32, i32
  }
}

</mosaic_0001>

<llo_original>
// kernel: tpu_custom_call.1
$region0: #{tpu_custom_call.1}
  #allocation0 [shape = 'u32[]', space=smem, size = 0x4, offset = 0x4, fixed_abs, tag = 'smem constant byte address 0x4 - core index']
  #allocation1 [shape = 'u32[144,128]{1,0:T(1,128)}', space=vmem, size = 0x12000, scoped, tag = 'internal scratch']
  %s0 = inlined_call_operand.hbm [shape: f32[8,8,128], index: 0, kind: input, shape index: {}]
  %s1 = inlined_call_operand.hbm [shape: f32[8,128], index: 1, kind: output, shape index: {}]
  %s2 = sld [smem:[#allocation0]]
  $region18: #{tpu_custom_call.1} parent=0
    _
  %s4 = ssub.s32 1, %s2
  %s5 = scalar_select 0, %s4, %s2
  $region1: #{tpu_custom_call.1} parent=0
    #allocation2 [shape = 'u8[32768]{0}', space=vmem, size = 0x8000, scoped, tag = 'input window, operand 0, single buffered']
    #allocation3 [shape = 's32[1]{0}', space=sflag, size = 0x4, scoped, tag = 'scoped memory for tpu_custom_call.1']
    #allocation4 [shape = 's32[1]{0}', space=sflag, size = 0x4, scoped, tag = 'scoped memory for tpu_custom_call.1']
    #allocation5 [shape = 'u8[4096]{0}', space=vmem, size = 0x1000, scoped, tag = 'output window, operand 0, single buffered']
    %6 = vsyncpa [#allocation3], 0
    %7 = vsyncpa [#allocation4], 0
    // Predicated region
    $region2: #{tpu_custom_call.1} parent=1 // pred_check
      _
    $region3: #{tpu_custom_call.1} parent=1 // pred_check_branch
      %9 = sbr.rel (0) target = $region5
    $region4: #{tpu_custom_call.1} parent=1 // pred_region
      %s11 = ssub.s32 1024, 1024
      %12 = vsyncadd [#allocation3], %s11
      %s13 = sshll.u32 [#allocation2], 4
      %s14 = int_to_ptr.vmem [resolvable:$true] %s13
      %19 = dma.hbm_to_vmem [thread:$0]  %s0, 1024, %s14, [#allocation3], 128, 128, 8
    $region5: #{tpu_custom_call.1} parent=1 // pred_fallthru
      _
    // Predicated region
    $region6: #{tpu_custom_call.1} parent=1 // pred_check
      _
    $region7: #{tpu_custom_call.1} parent=1 // pred_check_branch
      %21 = sbr.rel (0) target = $region9
    $region8: #{tpu_custom_call.1} parent=1 // pred_region
      %22 = dma.done [#allocation3], 1024
    $region9: #{tpu_custom_call.1} parent=1 // pred_fallthru
      _
    %v23 = vld [vmem:[#allocation2] sm:$0xff]
    %s24 = scalar_lea.vmem [#allocation2], 8
    %v25 = vld [vmem:[%s24] sm:$0xff]
    %s26 = scalar_lea.vmem [#allocation2], 16
    %v27 = vld [vmem:[%s26] sm:$0xff]
    %s28 = scalar_lea.vmem [#allocation2], 24
    %v29 = vld [vmem:[%s28] sm:$0xff]
    %s30 = scalar_lea.vmem [#allocation2], 32
    %v31 = vld [vmem:[%s30] sm:$0xff]
    %s32 = scalar_lea.vmem [#allocation2], 40
    %v33 = vld [vmem:[%s32] sm:$0xff]
    %s34 = scalar_lea.vmem [#allocation2], 48
    %v35 = vld [vmem:[%s34] sm:$0xff]
    %s36 = scalar_lea.vmem [#allocation2], 56
    %v37 = vld [vmem:[%s36] sm:$0xff]
    %v38 = vmax.f32 %v23, %v31
    %v39 = vmax.f32 %v25, %v33
    %v40 = vmin.f32 %v27, %v35
    %v41 = vmin.f32 %v29, %v37
    %v42 = vsub.f32 %v40, %v38
    %v43 = vmax.f32 %v42, 0.0
    %v44 = vsub.f32 %v41, %v39
    %v45 = vmax.f32 %v44, 0.0
    %v46 = vmul.f32 %v43, %v45
    %v47 = vsub.f32 %v27, %v23
    %v48 = vsub.f32 %v29, %v25
    %v49 = vmul.f32 %v47, %v48
    %v50 = vmax.f32 %v49, 0.0
    %v51 = vsub.f32 %v35, %v31
    %v52 = vsub.f32 %v37, %v33
    %v53 = vmul.f32 %v51, %v52
    %v54 = vmax.f32 %v53, 0.0
    %v55 = vadd.f32 %v50, %v54
    %v56 = vsub.f32 %v55, %v46
    %v57 = vadd.f32 %v56, 1e-09
    %v58 = vrcp.pop %v57
    %v59 = vmul.f32 %v57, %v58
    %v60 = vsub.f32 2.0, %v59
    %v61 = vmul.f32 %v58, %v60
    %v62 = vmul.f32 %v46, %v61
    %v63 = vmul.f32 %v62, %v62
    %v64 = vsub.f32 1.0, %v63
    %v65 = vmul.f32 %v64, 2.5
    %66 = vst [vmem:[#allocation5] sm:$0xff] %v65
    // Predicated region
    $region10: #{tpu_custom_call.1} parent=1 // pred_check
      _
    $region11: #{tpu_custom_call.1} parent=1 // pred_check_branch
      %68 = sbr.rel (0) target = $region13
    $region12: #{tpu_custom_call.1} parent=1 // pred_region
      %s70 = ssub.s32 128, 128
      %71 = vsyncadd [#allocation4], %s70
      %s73 = sshll.u32 [#allocation5], 4
      %s74 = int_to_ptr.vmem [resolvable:$true] %s73
      %76 = dma.vmem_to_hbm [thread:$0]  %s74, 128, %s1, [#allocation4]
    $region13: #{tpu_custom_call.1} parent=1 // pred_fallthru
      _
    // Predicated region
    $region14: #{tpu_custom_call.1} parent=1 // pred_check
      _
    $region15: #{tpu_custom_call.1} parent=1 // pred_check_branch
      %78 = sbr.rel (0) target = $region17
    $region16: #{tpu_custom_call.1} parent=1 // pred_region
      %79 = dma.done [#allocation4], 128
    $region17: #{tpu_custom_call.1} parent=1 // pred_fallthru
      _
    %80 = vsyncpa [#allocation3], 1
    %81 = vsyncpa [#allocation4], 1

</llo_original>
